<compile_context>
chip_gen: v7x
topology: tpu7x:2x2x1
jax: 0.10.0
libtpu: 0.0.40
codegen_flags: <defaults>
</compile_context>

<pallas_src>
import functools
import math

import jax
import jax.numpy as jnp
from jax.experimental import pallas as pl
from jax.experimental.pallas import tpu as pltpu


def _rate_adaption_kernel(x_ref, idx_ref, wt_ref, b_ref, out_ref, *,
                          n_rates, m_out, m_pad):
    # x_ref:   (tile_b, C, tHW)    f32  contiguous channel-major pixel slabs
    # idx_ref: (tile_b, 1, tHW)    i32  per-pixel rate index, lane-dense
    # wt_ref:  (R*Mp, C)           f32  weight bank, transposed, mask-pre-zeroed
    # b_ref:   (R*Mp, 1)           f32  bias bank, mask-pre-zeroed
    # out_ref: (tile_b, M, tHW)    f32
    wt = wt_ref[...]                                    # tiny, loaded once
    bb = b_ref[...]
    tile_b = x_ref.shape[0]
    t_hw = x_ref.shape[2]

    for bi in range(tile_b):                            # compile-time unrolled
        x = x_ref[bi]                                   # (C, tHW)
        idx = idx_ref[bi]                               # (1, tHW)
        acc = jnp.zeros((m_out, t_hw), jnp.float32)
        for r in range(n_rates):                        # R is a tiny constant
            # 8-row-aligned static slices of the stacked bank.
            w_r = wt[r * m_pad:(r + 1) * m_pad, :]      # (Mp, C)
            b_r = bb[r * m_pad:(r + 1) * m_pad, :]      # (Mp, 1)
            y_r = jnp.dot(w_r, x, preferred_element_type=jnp.float32) + b_r
            y_sel = y_r if m_out == m_pad else y_r[:m_out, :]
            sel = idx == r                              # (1, tHW)
            # NOTE: indexes outside [0, R) yield all-zero output/mask
            # (documented precondition, matches previous accepted behavior).
            acc = jnp.where(sel, y_sel, acc)
        out_ref[bi] = acc                               # rate-mask already folded in


def _choose_tiles(B, C, HW, M, m_pad, R, budget_bytes=12 << 20, max_tile_b=16):
    """Pick (tile_b, tile_hw) so double-buffered blocks + temporaries fit a
    conservative VMEM budget (safe on v5e/v6e default scoped limits and v7x)."""
    per_px_blocks = (C + 1 + M) * 4 * 2        # x + idx + out blocks, double-buffered
    per_px_temp = (2 * m_pad + M + 1) * 4      # y_r, acc, sel live per lane (slack)
    const = R * m_pad * (C + 1) * 4 * 2 + (1 << 20)

    def fits(tb, thw):
        return const + tb * thw * per_px_blocks + thw * per_px_temp <= budget_bytes

    # tile_hw: largest divisor of HW that is a multiple of 128 (or HW itself,
    # which is always a legal full-dim block) and fits with tile_b == 1.
    cands = [HW] + [k * 128 for k in range(HW // 128, 0, -1) if HW % (k * 128) == 0]
    cands = sorted(set(cands), reverse=True)
    tile_hw = cands[-1]
    for d in cands:
        if fits(1, d):
            tile_hw = d
            break

    # Small-HW regime: also block the batch dim to amortize per-step overhead.
    tile_b = 1
    if tile_hw == HW:
        for d in range(min(B, max_tile_b), 0, -1):
            if B % d == 0 and fits(d, tile_hw):
                tile_b = d
                break

    # Guarantee >= 2 grid steps (when splittable) so both v7x TensorCores work.
    if (B // tile_b) * (HW // tile_hw) == 1:
        if tile_b > 1:
            for d in range(tile_b // 2, 0, -1):
                if B % d == 0:
                    tile_b = d
                    break
        elif tile_hw % 256 == 0:
            tile_hw //= 2
    return tile_b, tile_hw


def rate_adaption_encoder(x, indexes, weight, bias, rate_choice,
                          tile_b=None, tile_hw=None):
    """x: (B, C, H, W) f32; indexes: (B*H*W,) int.

    Returns (x_masked (B, M, H, W) f32, mask (B, M, H, W) i32)."""
    B, C, H, W = x.shape
    HW = H * W
    R, _, M = weight.shape
    assert R == len(rate_choice)
    Mp = ((M + 7) // 8) * 8                     # pad per-rate row block to sublane tile

    auto_b, auto_hw = _choose_tiles(B, C, HW, M, Mp, R)
    if tile_b is None:
        tile_b = auto_b
    if tile_hw is None:
        tile_hw = auto_hw
    if B % tile_b != 0:
        tile_b = 1
    if HW % tile_hw != 0 or (tile_hw != HW and tile_hw % 128 != 0):
        tile_hw = HW

    # Inputs in their natural NCHW layout: (B, C, HW) is a contiguous view.
    x_slab = x.reshape(B, C, HW).astype(jnp.float32)
    idx = indexes.astype(jnp.int32).reshape(B, 1, HW)

    # One-time prep of the weight/bias bank:
    #  (R, C, M) -> (R, M, C); zero rows m >= rate_choice[r] (folds the rate
    #  mask into the parameters); pad M -> Mp; stack -> (R*Mp, C) / (R*Mp, 1).
    rc_vec = jnp.asarray(rate_choice, jnp.int32)
    keep = jnp.arange(M, dtype=jnp.int32)[None, :] < rc_vec[:, None]      # (R, M)
    w_t = jnp.transpose(weight.astype(jnp.float32), (0, 2, 1))            # (R, M, C)
    w_t = jnp.where(keep[:, :, None], w_t, 0.0)
    b_z = jnp.where(keep, bias.astype(jnp.float32), 0.0)                  # (R, M)
    if Mp != M:
        w_t = jnp.pad(w_t, ((0, 0), (0, Mp - M), (0, 0)))
        b_z = jnp.pad(b_z, ((0, 0), (0, Mp - M)))
    wt = w_t.reshape(R * Mp, C)
    b_bank = b_z.reshape(R * Mp, 1)

    kern = functools.partial(_rate_adaption_kernel,
                             n_rates=R, m_out=M, m_pad=Mp)

    footprint = (tile_b * tile_hw * (C + 1 + M) * 4 * 2
                 + tile_hw * (2 * Mp + M + 1) * 4
                 + R * Mp * (C + 1) * 4 * 2)
    vmem_limit = int(min(32 << 20, max(16 << 20, 2 * footprint)))

    cost = pl.CostEstimate(
        flops=2 * B * HW * R * Mp * C,
        transcendentals=0,
        bytes_accessed=B * HW * (C + M + 1) * 4 + R * Mp * (C + 1) * 4)

    out = pl.pallas_call(
        kern,
        out_shape=jax.ShapeDtypeStruct((B, M, HW), jnp.float32),
        grid_spec=pltpu.PrefetchScalarGridSpec(
            num_scalar_prefetch=0,
            grid=(B // tile_b, HW // tile_hw),
            in_specs=[
                pl.BlockSpec((tile_b, C, tile_hw), lambda gb, gj: (gb, 0, gj)),
                pl.BlockSpec((tile_b, 1, tile_hw), lambda gb, gj: (gb, 0, gj)),
                pl.BlockSpec((R * Mp, C), lambda gb, gj: (0, 0)),
                pl.BlockSpec((R * Mp, 1), lambda gb, gj: (0, 0)),
            ],
            out_specs=pl.BlockSpec((tile_b, M, tile_hw),
                                   lambda gb, gj: (gb, 0, gj)),
        ),
        compiler_params=pltpu.CompilerParams(
            dimension_semantics=("parallel", "parallel"),
            vmem_limit_bytes=vmem_limit),
        cost_estimate=cost,
    )(x_slab, idx, wt, b_bank)

    # (B, M, HW) -> (B, M, H, W): pure reshape, no transpose.
    x_masked = out.reshape(B, M, H, W)

    # Mask is a pure function of indexes/rate_choice -> rebuild with cheap XLA
    # outside the kernel instead of writing it from the kernel.
    # TODO(synk): returned mask is int32; PyTorch returns int64 (values identical).
    rc_pixel = rc_vec[indexes.astype(jnp.int32)].reshape(B, 1, H, W)
    col = jnp.arange(M, dtype=jnp.int32).reshape(1, M, 1, 1)
    mask_bchw = (col < rc_pixel).astype(jnp.int32)
    return x_masked, mask_bchw


def _reference(x, indexes, weight, bias, rate_choice):
    """Pure-JAX transliteration of the PyTorch forward for validation."""
    B, C, H, W = x.shape
    M = weight.shape[2]
    x_blc = jnp.transpose(x.reshape(B, C, H * W), (0, 2, 1))          # (B, HW, C)
    w = weight[indexes].reshape(B, H * W, C, M)
    b = bias[indexes].reshape(B, H * W, M)
    rc = jnp.asarray(rate_choice, jnp.int32)[indexes].reshape(B, H * W, 1)
    col = jnp.arange(M, dtype=jnp.int32)[None, None, :]
    mask = (col < rc).astype(jnp.int32)                               # (B, HW, M)
    y = (jnp.einsum('blc,blcm->blm', x_blc, w) + b) * mask
    x_masked = jnp.transpose(y.reshape(B, H, W, M), (0, 3, 1, 2))
    mask_bchw = jnp.transpose(mask.reshape(B, H, W, M), (0, 3, 1, 2))
    return x_masked, mask_bchw


if __name__ == "__main__":
    # Small, deterministic config (module default H = W = 16).
    B, C, H, W = 2, 8, 16, 16
    rate_choice = [2, 4, 8]
    R = len(rate_choice)
    M = max(rate_choice)

    key = jax.random.PRNGKey(0)
    k_w, k_b, k_x, k_idx = jax.random.split(key, 4)

    # Deterministic parameter init mirroring nn.init:
    #   kaiming_normal_(a=sqrt(5)): gain = sqrt(2/(1+5)), fan_in = C*M
    std = math.sqrt(2.0 / (1.0 + 5.0)) / math.sqrt(C * M)
    weight = std * jax.random.normal(k_w, (R, C, M), dtype=jnp.float32)
    bound = 1.0 / math.sqrt(C)
    bias = jax.random.uniform(k_b, (R, M), minval=-bound, maxval=bound,
                              dtype=jnp.float32)

    x = jax.random.normal(k_x, (B, C, H, W), dtype=jnp.float32)
    indexes = jax.random.randint(k_idx, (B * H * W,), 0, R, dtype=jnp.int32)

    out, mask = rate_adaption_encoder(x, indexes, weight, bias, rate_choice)
    out = jax.block_until_ready(out)
    mask = jax.block_until_ready(mask)

    ref_out, ref_mask = _reference(x, indexes, weight, bias, rate_choice)
    assert out.shape == (B, M, H, W) and mask.shape == (B, M, H, W)
    assert jnp.allclose(out, ref_out, atol=1e-5, rtol=1e-5)
    assert jnp.array_equal(mask, ref_mask)

    print("KERNEL_OK")
</pallas_src>

<mosaic_0001>
module attributes {stable_mosaic.version = 11 : i64} {
  func.func @_rate_adaption_kernel(%arg0: i32, %arg1: i32, %arg2: memref<1x8x256xf32, #tpu.memory_space<vmem>>, %arg3: memref<1x1x256xi32, #tpu.memory_space<vmem>>, %arg4: memref<24x8xf32, #tpu.memory_space<vmem>>, %arg5: memref<24x1xf32, #tpu.memory_space<vmem>>, %arg6: memref<1x8x256xf32, #tpu.memory_space<vmem>>) attributes {dimension_semantics = [#tpu.dimension_semantics<parallel>, #tpu.dimension_semantics<parallel>], iteration_bounds = array<i64: 2, 1>, scalar_prefetch = 0 : i64, scratch_operands = 0 : i64, tpu.core_type = #tpu.core_type<tc>, window_params = [{transform_indices = @transform_0, window_bounds = array<i64: 1, 8, 256>}, {transform_indices = @transform_1, window_bounds = array<i64: 1, 1, 256>}, {pipeline_mode = #tpu.pipeline_mode<synchronous>, transform_indices = @transform_2, window_bounds = array<i64: 24, 8>}, {pipeline_mode = #tpu.pipeline_mode<synchronous>, transform_indices = @transform_3, window_bounds = array<i64: 24, 1>}, {transform_indices = @transform_4, window_bounds = array<i64: 1, 8, 256>}]} {
    %c0 = arith.constant 0 : index
    %c0_0 = arith.constant 0 : index
    %0 = vector.load %arg4[%c0, %c0_0] : memref<24x8xf32, #tpu.memory_space<vmem>>, vector<24x8xf32>
    %c0_1 = arith.constant 0 : index
    %c0_2 = arith.constant 0 : index
    %1 = vector.load %arg5[%c0_1, %c0_2] : memref<24x1xf32, #tpu.memory_space<vmem>>, vector<24x1xf32>
    %c0_3 = arith.constant 0 : index
    %c0_4 = arith.constant 0 : index
    %c0_5 = arith.constant 0 : index
    %2 = vector.load %arg2[%c0_3, %c0_4, %c0_5] : memref<1x8x256xf32, #tpu.memory_space<vmem>>, vector<1x8x256xf32>
    %3 = vector.shape_cast %2 : vector<1x8x256xf32> to vector<8x256xf32>
    %c0_6 = arith.constant 0 : index
    %c0_7 = arith.constant 0 : index
    %c0_8 = arith.constant 0 : index
    %4 = vector.load %arg3[%c0_6, %c0_7, %c0_8] : memref<1x1x256xi32, #tpu.memory_space<vmem>>, vector<1x1x256xi32>
    %5 = vector.shape_cast %4 : vector<1x1x256xi32> to vector<1x256xi32>
    %cst = arith.constant 0.000000e+00 : f32
    %6 = vector.broadcast %cst : f32 to vector<8x256xf32>
    %7 = vector.extract_strided_slice %0 {offsets = [0, 0], sizes = [8, 8], strides = [1, 1]} : vector<24x8xf32> to vector<8x8xf32>
    %8 = vector.extract_strided_slice %1 {offsets = [0, 0], sizes = [8, 1], strides = [1, 1]} : vector<24x1xf32> to vector<8x1xf32>
    %cst_9 = arith.constant dense<0.000000e+00> : vector<8x256xf32>
    %9 = tpu.matmul %7, %3, %cst_9 {dimension_numbers = #tpu.dot_dimension_numbers<[1], [0], [0], [1], [0, 0, 1, 1], [], []>} : vector<8x8xf32>, vector<8x256xf32>, vector<8x256xf32> -> vector<8x256xf32>
    %10 = vector.broadcast %8 : vector<8x1xf32> to vector<8x256xf32>
    %11 = arith.addf %9, %10 : vector<8x256xf32>
    %c0_i32 = arith.constant 0 : i32
    %12 = vector.broadcast %c0_i32 : i32 to vector<1x256xi32>
    %13 = arith.cmpi eq, %5, %12 : vector<1x256xi32>
    %14 = vector.shape_cast %13 : vector<1x256xi1> to vector<1x256xi1>
    %15 = vector.broadcast %14 : vector<1x256xi1> to vector<8x256xi1>
    %16 = arith.select %15, %11, %6 : vector<8x256xi1>, vector<8x256xf32>
    %17 = vector.extract_strided_slice %0 {offsets = [8, 0], sizes = [8, 8], strides = [1, 1]} : vector<24x8xf32> to vector<8x8xf32>
    %18 = vector.extract_strided_slice %1 {offsets = [8, 0], sizes = [8, 1], strides = [1, 1]} : vector<24x1xf32> to vector<8x1xf32>
    %cst_10 = arith.constant dense<0.000000e+00> : vector<8x256xf32>
    %19 = tpu.matmul %17, %3, %cst_10 {dimension_numbers = #tpu.dot_dimension_numbers<[1], [0], [0], [1], [0, 0, 1, 1], [], []>} : vector<8x8xf32>, vector<8x256xf32>, vector<8x256xf32> -> vector<8x256xf32>
    %20 = vector.broadcast %18 : vector<8x1xf32> to vector<8x256xf32>
    %21 = arith.addf %19, %20 : vector<8x256xf32>
    %c1_i32 = arith.constant 1 : i32
    %22 = vector.broadcast %c1_i32 : i32 to vector<1x256xi32>
    %23 = arith.cmpi eq, %5, %22 : vector<1x256xi32>
    %24 = vector.shape_cast %23 : vector<1x256xi1> to vector<1x256xi1>
    %25 = vector.broadcast %24 : vector<1x256xi1> to vector<8x256xi1>
    %26 = arith.select %25, %21, %16 : vector<8x256xi1>, vector<8x256xf32>
    %27 = vector.extract_strided_slice %0 {offsets = [16, 0], sizes = [8, 8], strides = [1, 1]} : vector<24x8xf32> to vector<8x8xf32>
    %28 = vector.extract_strided_slice %1 {offsets = [16, 0], sizes = [8, 1], strides = [1, 1]} : vector<24x1xf32> to vector<8x1xf32>
    %cst_11 = arith.constant dense<0.000000e+00> : vector<8x256xf32>
    %29 = tpu.matmul %27, %3, %cst_11 {dimension_numbers = #tpu.dot_dimension_numbers<[1], [0], [0], [1], [0, 0, 1, 1], [], []>} : vector<8x8xf32>, vector<8x256xf32>, vector<8x256xf32> -> vector<8x256xf32>
    %30 = vector.broadcast %28 : vector<8x1xf32> to vector<8x256xf32>
    %31 = arith.addf %29, %30 : vector<8x256xf32>
    %c2_i32 = arith.constant 2 : i32
    %32 = vector.broadcast %c2_i32 : i32 to vector<1x256xi32>
    %33 = arith.cmpi eq, %5, %32 : vector<1x256xi32>
    %34 = vector.shape_cast %33 : vector<1x256xi1> to vector<1x256xi1>
    %35 = vector.broadcast %34 : vector<1x256xi1> to vector<8x256xi1>
    %36 = arith.select %35, %31, %26 : vector<8x256xi1>, vector<8x256xf32>
    %c0_12 = arith.constant 0 : index
    %c0_13 = arith.constant 0 : index
    %c0_14 = arith.constant 0 : index
    %37 = vector.load %arg6[%c0_12, %c0_13, %c0_14] : memref<1x8x256xf32, #tpu.memory_space<vmem>>, vector<1x8x256xf32>
    %38 = vector.shape_cast %37 : vector<1x8x256xf32> to vector<8x256xf32>
    %39 = vector.shape_cast %36 : vector<8x256xf32> to vector<1x8x256xf32>
    tpu.vector_store %arg6[%c0_12, %c0_13, %c0_14], %39 {strides = array<i32>} : memref<1x8x256xf32, #tpu.memory_space<vmem>>, vector<1x8x256xf32>,
    return
  }
  func.func @transform_0(%arg0: i32, %arg1: i32) -> (i32, i32, i32) {
    %c0_i32 = arith.constant 0 : i32
    %c0_i32_0 = arith.constant 0 : i32
    return %arg0, %c0_i32, %arg1 : i32, i32, i32
  }
  func.func @transform_1(%arg0: i32, %arg1: i32) -> (i32, i32, i32) {
    %c0_i32 = arith.constant 0 : i32
    %c0_i32_0 = arith.constant 0 : i32
    return %arg0, %c0_i32, %arg1 : i32, i32, i32
  }
  func.func @transform_2(%arg0: i32, %arg1: i32) -> (i32, i32) {
    %c0_i32 = arith.constant 0 : i32
    %c0_i32_0 = arith.constant 0 : i32
    %c0_i32_1 = arith.constant 0 : i32
    return %c0_i32, %c0_i32_0 : i32, i32
  }
  func.func @transform_3(%arg0: i32, %arg1: i32) -> (i32, i32) {
    %c0_i32 = arith.constant 0 : i32
    %c0_i32_0 = arith.constant 0 : i32
    %c0_i32_1 = arith.constant 0 : i32
    return %c0_i32, %c0_i32_0 : i32, i32
  }
  func.func @transform_4(%arg0: i32, %arg1: i32) -> (i32, i32, i32) {
    %c0_i32 = arith.constant 0 : i32
    %c0_i32_0 = arith.constant 0 : i32
    return %arg0, %c0_i32, %arg1 : i32, i32, i32
  }
}

</mosaic_0001>

<llo_original>
// kernel: tpu_custom_call.1
$region0: #{tpu_custom_call.1}
  #allocation0 [shape = 'u32[]', space=smem, size = 0x4, offset = 0x4, fixed_abs, tag = 'smem constant byte address 0x4 - core index']
  #allocation1 [shape = 'u32[144,128]{1,0:T(1,128)}', space=vmem, size = 0x12000, scoped, tag = 'internal scratch']
  %s0 = inlined_call_operand.vmem [shape: f32[2,8,256], index: 0, kind: input, shape index: {}]
  %s1 = inlined_call_operand.vmem [shape: s32[2,1,256], index: 1, kind: input, shape index: {}]
  %s2 = inlined_call_operand.vmem [shape: f32[24,8], index: 2, kind: input, shape index: {}]
  %s3 = inlined_call_operand.vmem [shape: f32[24,1], index: 3, kind: input, shape index: {}]
  %s4 = inlined_call_operand.hbm [shape: f32[2,8,256], index: 4, kind: output, shape index: {}]
  %s5 = sld [smem:[#allocation0]]
  $region49: #{tpu_custom_call.1} parent=0
    _
  %s7 = ssub.s32 1, %s5
  %s8 = scalar_select 0, %s7, %s5
  $region1: #{tpu_custom_call.1} parent=0
    #allocation2 [shape = 'u8[16384]{0}', space=vmem, size = 0x4000, scoped, tag = 'output window, operand 0']
    #allocation3 [shape = 's32[2]{0}', space=sflag, size = 0x8, scoped, tag = 'scoped memory for tpu_custom_call.1']
    %9 = vsyncpa [#allocation3], 0
    %s10 = scalar_lea.sflag [#allocation3], 1
    %11 = vsyncpa %s10, 0
    loop: start=0, step=1, limit=4
    $region2: #{tpu_custom_call.1} parent=1 // loop_pre_header
      _
    $region3: #{tpu_custom_call.1} parent=1 // loop_header
      %s13 = sphi 0, %s17
      %p14 = scmp.ge.s32.totalorder %s13, 4
      %s20 = sphi 0, %s32
      %s21 = sphi 0, %s28
      %s22 = sphi 0, %s20
      %s23 = sphi 0, %s21
      %s24 = sphi 0, %s22
      %s25 = sphi 0, %s23
      %s37 = sphi 0, %s39
      %s40 = sphi 0, %s37
      %s41 = sphi 0, %s40
      %s57 = sphi 0, %s41
      %s65 = sphi 0, %s67
      %s68 = sphi 0, %s65
      %s69 = sphi 0, %s68
      %s85 = sphi 0, %s69
      %s89 = sphi 0, %s89
      %s91 = sphi 0, %s89
      %s92 = sphi 0, %s91
      %s106 = sphi 0, %s92
      %s110 = sphi 0, %s110
      %s112 = sphi 0, %s110
      %s113 = sphi 0, %s112
      %s127 = sphi 0, %s113
      %s135 = sphi 0, %s137
      %s138 = sphi 0, %s135
      %s139 = sphi 0, %s138
      %s155 = sphi 0, %s139
    $region4: #{tpu_custom_call.1} parent=1 // loop_header_branch
      %16 = sbr.rel (%p14) target = $region8
    $region5: #{tpu_custom_call.1} parent=1 // loop_body
      %s18 = ssub.s32 %s13, 1
      %s19 = ssub.s32 %s13, 2
      %s26 = sadd.s32 1, %s21
      %p27 = scmp.ge.s32.totalorder %s26, 1
      %s28 = scalar_select %p27, 0, %s26
      %s29 = sadd.s32 1, %s20
      %s30 = scalar_select %p27, %s29, %s20
      %p31 = scmp.ge.s32.totalorder %s30, 2
      %s32 = scalar_select %p31, 0, %s30
      %s33 = ssub.s32 %s20, %s32
      %s34 = ssub.s32 %s21, %s28
      %s35 = sor.u32 %s33, %s34
      %p36 = scmp.eq.s32.totalorder %s35, 0
      %s38 = sadd.s32 %s37, 1
      %s39 = scalar_select %p36, %s37, %s38
      %p42 = pneg %p36
      %p43 = scmp.eq.s32.totalorder %s13, 1
      %p44 = por %p42, %p43
      %p45 = scmp.ne.s32.totalorder %s37, %s40
      %p46 = scmp.eq.s32.totalorder %s13, 0
      %p47 = por %p45, %p46
      %p48 = scmp.ne.s32.totalorder %s37, %s40
      %p49 = scmp.eq.s32.totalorder %s18, 1
      %p50 = por %p48, %p49
      %p51 = scmp.ne.s32.totalorder %s40, %s41
      %p52 = scmp.eq.s32.totalorder %s18, 0
      %p53 = por %p51, %p52
      %p54 = scmp.ne.s32.totalorder %s40, %s41
      %p55 = scmp.eq.s32.totalorder %s19, 1
      %p56 = por %p54, %p55
      %p58 = scmp.ne.s32.totalorder %s41, %s57
      %p59 = scmp.eq.s32.totalorder %s19, 0
      %p60 = por %p58, %p59
      %s61 = ssub.s32 %s20, %s32
      %s62 = ssub.s32 %s21, %s28
      %s63 = sor.u32 %s61, %s62
      %p64 = scmp.eq.s32.totalorder %s63, 0
      %s66 = sadd.s32 %s65, 1
      %s67 = scalar_select %p64, %s65, %s66
      %p70 = pneg %p64
      %p71 = scmp.eq.s32.totalorder %s13, 1
      %p72 = por %p70, %p71
      %p73 = scmp.ne.s32.totalorder %s65, %s68
      %p74 = scmp.eq.s32.totalorder %s13, 0
      %p75 = por %p73, %p74
      %p76 = scmp.ne.s32.totalorder %s65, %s68
      %p77 = scmp.eq.s32.totalorder %s18, 1
      %p78 = por %p76, %p77
      %p79 = scmp.ne.s32.totalorder %s68, %s69
      %p80 = scmp.eq.s32.totalorder %s18, 0
      %p81 = por %p79, %p80
      %p82 = scmp.ne.s32.totalorder %s68, %s69
      %p83 = scmp.eq.s32.totalorder %s19, 1
      %p84 = por %p82, %p83
      %p86 = scmp.ne.s32.totalorder %s69, %s85
      %p87 = scmp.eq.s32.totalorder %s19, 0
      %p88 = por %p86, %p87
      %s90 = sadd.s32 %s89, 1
      %p93 = scmp.eq.s32.totalorder %s13, 1
      %p94 = scmp.ne.s32.totalorder %s89, %s91
      %p95 = scmp.eq.s32.totalorder %s13, 0
      %p96 = por %p94, %p95
      %p97 = scmp.ne.s32.totalorder %s89, %s91
      %p98 = scmp.eq.s32.totalorder %s18, 1
      %p99 = por %p97, %p98
      %p100 = scmp.ne.s32.totalorder %s91, %s92
      %p101 = scmp.eq.s32.totalorder %s18, 0
      %p102 = por %p100, %p101
      %p103 = scmp.ne.s32.totalorder %s91, %s92
      %p104 = scmp.eq.s32.totalorder %s19, 1
      %p105 = por %p103, %p104
      %p107 = scmp.ne.s32.totalorder %s92, %s106
      %p108 = scmp.eq.s32.totalorder %s19, 0
      %p109 = por %p107, %p108
      %s111 = sadd.s32 %s110, 1
      %p114 = scmp.eq.s32.totalorder %s13, 1
      %p115 = scmp.ne.s32.totalorder %s110, %s112
      %p116 = scmp.eq.s32.totalorder %s13, 0
      %p117 = por %p115, %p116
      %p118 = scmp.ne.s32.totalorder %s110, %s112
      %p119 = scmp.eq.s32.totalorder %s18, 1
      %p120 = por %p118, %p119
      %p121 = scmp.ne.s32.totalorder %s112, %s113
      %p122 = scmp.eq.s32.totalorder %s18, 0
      %p123 = por %p121, %p122
      %p124 = scmp.ne.s32.totalorder %s112, %s113
      %p125 = scmp.eq.s32.totalorder %s19, 1
      %p126 = por %p124, %p125
      %p128 = scmp.ne.s32.totalorder %s113, %s127
      %p129 = scmp.eq.s32.totalorder %s19, 0
      %p130 = por %p128, %p129
      %s131 = ssub.s32 %s20, %s32
      %s132 = ssub.s32 %s21, %s28
      %s133 = sor.u32 %s131, %s132
      %p134 = scmp.eq.s32.totalorder %s133, 0
      %s136 = sadd.s32 %s135, 1
      %s137 = scalar_select %p134, %s135, %s136
      %p140 = pneg %p134
      %p141 = scmp.eq.s32.totalorder %s13, 1
      %p142 = por %p140, %p141
      %p143 = scmp.ne.s32.totalorder %s135, %s138
      %p144 = scmp.eq.s32.totalorder %s13, 0
      %p145 = por %p143, %p144
      %p146 = scmp.ne.s32.totalorder %s135, %s138
      %p147 = scmp.eq.s32.totalorder %s18, 1
      %p148 = por %p146, %p147
      %p149 = scmp.ne.s32.totalorder %s138, %s139
      %p150 = scmp.eq.s32.totalorder %s18, 0
      %p151 = por %p149, %p150
      %p152 = scmp.ne.s32.totalorder %s138, %s139
      %p153 = scmp.eq.s32.totalorder %s19, 1
      %p154 = por %p152, %p153
      %p156 = scmp.ne.s32.totalorder %s139, %s155
      %p157 = scmp.eq.s32.totalorder %s19, 0
      %p158 = por %p156, %p157
      %p159 = scmp.le.s32.totalorder 1, %s13
      %p160 = scmp.lt.s32.totalorder %s13, 3
      %p161 = pnand %p159, %p160
      %p162 = pneg %p161
      // Predicated region
      $region9: #{tpu_custom_call.1} parent=5 // pred_check
        _
      $region10: #{tpu_custom_call.1} parent=5 // pred_check_branch
        %164 = sbr.rel (%p161) target = $region12
      $region11: #{tpu_custom_call.1} parent=5 // pred_region
        %s165 = ssub.s32 %s13, 1
        // Predicated region
        $region13: #{tpu_custom_call.1} parent=11 // pred_check
          %p166 = pneg %p102
        $region14: #{tpu_custom_call.1} parent=11 // pred_check_branch
          %168 = sbr.rel (%p166) target = $region16
        $region15: #{tpu_custom_call.1} parent=11 // pred_region
          _
        $region16: #{tpu_custom_call.1} parent=11 // pred_fallthru
          _
        // Predicated region
        $region17: #{tpu_custom_call.1} parent=11 // pred_check
          %p169 = pneg %p123
        $region18: #{tpu_custom_call.1} parent=11 // pred_check_branch
          %171 = sbr.rel (%p169) target = $region20
        $region19: #{tpu_custom_call.1} parent=11 // pred_region
          _
        $region20: #{tpu_custom_call.1} parent=11 // pred_fallthru
          _
      $region12: #{tpu_custom_call.1} parent=5 // pred_fallthru
        _
      %p172 = scmp.lt.s32.totalorder %s13, 2
      // Predicated region
      $region21: #{tpu_custom_call.1} parent=5 // pred_check
        %p173 = pneg %p172
      $region22: #{tpu_custom_call.1} parent=5 // pred_check_branch
        %175 = sbr.rel (%p173) target = $region24
      $region23: #{tpu_custom_call.1} parent=5 // pred_region
        // Predicated region
        $region25: #{tpu_custom_call.1} parent=23 // pred_check
          %p176 = pneg %p47
        $region26: #{tpu_custom_call.1} parent=23 // pred_check_branch
          %178 = sbr.rel (%p176) target = $region28
        $region27: #{tpu_custom_call.1} parent=23 // pred_region
          %s179 = smul.u32 2, %s21
          %p180 = scmp.lt.s32.totalorder %s20, 1
          %s181 = scalar_select %p180, %s20, 1
          %p182 = scmp.lt.s32.totalorder %s179, 1
          %s183 = scalar_select %p182, %s179, 1
          %s184 = smul.addr %s181, 2
          %s185 = sadd.s32 %s183, %s184
          %s186 = smul.addr %s185, 8
          %s187 = scalar_lea.vmem %s0, %s186
          %s188 = smul.u32 2, %s21
        $region28: #{tpu_custom_call.1} parent=23 // pred_fallthru
          _
        // Predicated region
        $region29: #{tpu_custom_call.1} parent=23 // pred_check
          %p189 = pneg %p75
        $region30: #{tpu_custom_call.1} parent=23 // pred_check_branch
          %191 = sbr.rel (%p189) target = $region32
        $region31: #{tpu_custom_call.1} parent=23 // pred_region
          %s192 = smul.u32 2, %s21
          %p193 = scmp.lt.s32.totalorder %s20, 1
          %s194 = scalar_select %p193, %s20, 1
          %p195 = scmp.lt.s32.totalorder %s192, 1
          %s196 = scalar_select %p195, %s192, 1
          %s197 = smul.addr %s194, 2
          %s198 = sadd.s32 %s196, %s197
          %s199 = scalar_lea.vmem %s1, %s198
          %s200 = smul.u32 2, %s21
        $region32: #{tpu_custom_call.1} parent=23 // pred_fallthru
          _
      $region24: #{tpu_custom_call.1} parent=5 // pred_fallthru
        _
      %p201 = scmp.le.s32.totalorder 1, %s13
      %p202 = scmp.lt.s32.totalorder %s13, 3
      %p203 = pnand %p201, %p202
      %p204 = pneg %p203
      // Predicated region
      $region33: #{tpu_custom_call.1} parent=5 // pred_check
        _
      $region34: #{tpu_custom_call.1} parent=5 // pred_check_branch
        %206 = sbr.rel (%p203) target = $region36
      $region35: #{tpu_custom_call.1} parent=5 // pred_region
        %s207 = ssub.s32 %s13, 1
        %s208 = smul.u32 2, %s23
        %p209 = scmp.lt.s32.totalorder %s22, 1
        %s210 = scalar_select %p209, %s22, 1
        %p211 = scmp.lt.s32.totalorder %s208, 1
        %s212 = scalar_select %p211, %s208, 1
        %s213 = smul.addr %s210, 2
        %s214 = sadd.s32 %s212, %s213
        %s215 = smul.addr %s214, 8
        %s216 = scalar_lea.vmem %s0, %s215
        %p217 = pneg %p53
        %p218 = pneg %p50
        %s219 = smul.u32 2, %s23
        %p220 = scmp.lt.s32.totalorder %s22, 1
        %s221 = scalar_select %p220, %s22, 1
        %p222 = scmp.lt.s32.totalorder %s219, 1
        %s223 = scalar_select %p222, %s219, 1
        %s224 = smul.addr %s221, 2
        %s225 = sadd.s32 %s223, %s224
        %s226 = scalar_lea.vmem %s1, %s225
        %p227 = pneg %p81
        %p228 = pneg %p78
        %p229 = pneg %p102
        %p230 = pneg %p99
        %p231 = pneg %p123
        %p232 = pneg %p120
        %p233 = pneg %p151
        %p234 = pneg %p148
        %s235 = sand.u32 %s138, 1
        %s236 = scalar_lea.sflag [#allocation3], %s235
        %s237 = sand.u32 %s138, 1
        %s238 = smul.addr %s237, 16
        %s239 = scalar_lea.vmem [#allocation2], %s238
        %s240 = smul.u32 2, %s23
        %p241 = scmp.lt.s32.totalorder %s22, 1
        %s242 = scalar_select %p241, %s22, 1
        %p243 = scmp.lt.s32.totalorder %s240, 1
        %s244 = scalar_select %p243, %s240, 1
        %s245 = smul.addr %s242, 2
        %s246 = sadd.s32 %s244, %s245
        %s247 = smul.addr %s246, 8
        %s248 = scalar_lea.vmem %s0, %s247
        %s249 = smul.u32 2, %s23
        %s250 = smul.u32 2, %s23
        %p251 = scmp.lt.s32.totalorder %s22, 1
        %s252 = scalar_select %p251, %s22, 1
        %p253 = scmp.lt.s32.totalorder %s250, 1
        %s254 = scalar_select %p253, %s250, 1
        %s255 = smul.addr %s252, 2
        %s256 = sadd.s32 %s254, %s255
        %s257 = scalar_lea.vmem %s1, %s256
        %s258 = smul.u32 2, %s23
        %s259 = smul.u32 2, %s23
        %v260 = vld [vmem:[%s2] sm:$0xff]
        %v261 = vld [vmem:[%s2 + $0x8] sm:$0xff]
        %v262 = vld [vmem:[%s2 + $0x10] sm:$0xff]
        %v263 = vld [vmem:[%s3] sm:$0xff]
        %v264 = vld [vmem:[%s3 + $0x8] sm:$0xff]
        %v265 = vld [vmem:[%s3 + $0x10] sm:$0xff]
        %v266 = vld [vmem:[%s248] sm:$0xff]
        %v267 = vld [vmem:[%s248 + $0x8] sm:$0xff]
        %v268 = vld [vmem:[%s257] sm:$0x3]
        %270 = vset.pattern.permute.xlu0 0
        %271 = vperm.xlu0 %270, %v263
        %v272 = vpop.permute.xlu0 %271
        %vm274 = vcmask 64512
        %v276 = vsel %vm274, %v260, 0
        %278 = vmatprep.subr.mxu0 %v267
        %279 = vmatpush1.msra.mxu0 %v266
        %280 = vmatprep.subr.mxu0 0.0
        %281 = vmatpush1.msra.mxu0 0.0
        %282 = vmatprep.subr.mxu0 0.0
        %283 = vmatpush1.msra.mxu0 0.0
        %284 = vmatprep.subr.mxu0 0.0
        %285 = vmatpush1.msra.mxu0 0.0
        %286 = vmatprep.subr.mxu0 0.0
        %287 = vmatpush1.msra.mxu0 0.0
        %288 = vmatprep.subr.mxu0 0.0
        %289 = vmatpush1.msra.mxu0 0.0
        %290 = vmatprep.subr.mxu0 0.0
        %291 = vmatpush1.msra.mxu0 0.0
        %292 = vmatprep.subr.mxu0 0.0
        %293 = vmatpush1.msra.mxu0 0.0
        %294 = vmatprep.subr.mxu0 0.0
        %295 = vmatpush1.msra.mxu0 0.0
        %296 = vmatprep.subr.mxu0 0.0
        %297 = vmatpush1.msra.mxu0 0.0
        %298 = vmatprep.subr.mxu0 0.0
        %299 = vmatpush1.msra.mxu0 0.0
        %300 = vmatprep.subr.mxu0 0.0
        %301 = vmatpush1.msra.mxu0 0.0
        %302 = vmatprep.subr.mxu0 0.0
        %303 = vmatpush1.msra.mxu0 0.0
        %304 = vmatprep.subr.mxu0 0.0
        %305 = vmatpush1.msra.mxu0 0.0
        %306 = vmatprep.subr.mxu0 0.0
        %307 = vmatpush1.msra.mxu0 0.0
        %308 = vmatprep.subr.mxu0 0.0
        %309 = vmatpush1.msra.mxu0 0.0
        %310 = vmatprep.subr.mxu0 0.0
        %311 = vmatpush1.msra.mxu0 0.0
        %312 = vmatprep.subr.mxu0 0.0
        %313 = vmatpush1.msra.mxu0 0.0
        %314 = vmatprep.subr.mxu0 0.0
        %315 = vmatpush1.msra.mxu0 0.0
        %316 = vmatprep.subr.mxu0 0.0
        %317 = vmatpush1.msra.mxu0 0.0
        %318 = vmatprep.subr.mxu0 0.0
        %319 = vmatpush1.msra.mxu0 0.0
        %320 = vmatprep.subr.mxu0 0.0
        %321 = vmatpush1.msra.mxu0 0.0
        %322 = vmatprep.subr.mxu0 0.0
        %323 = vmatpush1.msra.mxu0 0.0
        %324 = vmatprep.subr.mxu0 0.0
        %325 = vmatpush1.msra.mxu0 0.0
        %326 = vmatprep.subr.mxu0 0.0
        %327 = vmatpush1.msra.mxu0 0.0
        %328 = vmatprep.subr.mxu0 0.0
        %329 = vmatpush1.msra.mxu0 0.0
        %330 = vmatprep.subr.mxu0 0.0
        %331 = vmatpush1.msra.mxu0 0.0
        %332 = vmatprep.subr.mxu0 0.0
        %333 = vmatpush1.msra.mxu0 0.0
        %334 = vmatprep.subr.mxu0 0.0
        %335 = vmatpush1.msra.mxu0 0.0
        %336 = vmatprep.subr.mxu0 0.0
        %337 = vmatpush1.msra.mxu0 0.0
        %338 = vmatprep.subr.mxu0 0.0
        %339 = vmatpush1.msra.mxu0 0.0
        %340 = vmatprep.subr.mxu0 0.0
        %341 = vmatpush1.msra.mxu0 0.0
        %342 = vmatprep.mubr.f32.mxu0 0.0
        %343 = vmatmul.mubr.f32.gmra.mrb[0].mxu0 %v276
        %v344 = vpop.f32.mrb[0].mxu0
        %v345 = vadd.f32 %v272, %v344
        %v346 = vpop.f32.mrb[0].mxu0
        %v347 = vadd.f32 %v272, %v346
        %348 = vdwg.mxu0
        %vm349 = vcmp.eq.s32.totalorder %v268, 0
        %v350 = vsel %vm349, 1, 0
        %v351 = vlaneseq
        %v352 = vshrl.u32 %v351, 7
        %v353 = vsub.s32 0, %v352
        %v354 = vrot.slane %v350, %v353
        %v355 = vlaneseq
        %v356 = vshrl.u32 %v355, 7
        %v357 = vsub.s32 1, %v356
        %v358 = vrot.slane %v350, %v357
        %vm359 = vcmp.eq.s32.totalorder %v354, 1
        %vm360 = vcmp.eq.s32.totalorder %v358, 1
        %v361 = vsel %vm359, %v345, 0.0
        %v362 = vsel %vm360, %v347, 0.0
        %364 = vset.pattern.permute.xlu0 0
        %365 = vperm.xlu0 %364, %v264
        %v366 = vpop.permute.xlu0 %365
        %v369 = vsel %vm274, %v261, 0
        %371 = vmatprep.subr.mxu0 %v267
        %372 = vmatpush1.msra.mxu0 %v266
        %373 = vmatprep.subr.mxu0 0.0
        %374 = vmatpush1.msra.mxu0 0.0
        %375 = vmatprep.subr.mxu0 0.0
        %376 = vmatpush1.msra.mxu0 0.0
        %377 = vmatprep.subr.mxu0 0.0
        %378 = vmatpush1.msra.mxu0 0.0
        %379 = vmatprep.subr.mxu0 0.0
        %380 = vmatpush1.msra.mxu0 0.0
        %381 = vmatprep.subr.mxu0 0.0
        %382 = vmatpush1.msra.mxu0 0.0
        %383 = vmatprep.subr.mxu0 0.0
        %384 = vmatpush1.msra.mxu0 0.0
        %385 = vmatprep.subr.mxu0 0.0
        %386 = vmatpush1.msra.mxu0 0.0
        %387 = vmatprep.subr.mxu0 0.0
        %388 = vmatpush1.msra.mxu0 0.0
        %389 = vmatprep.subr.mxu0 0.0
        %390 = vmatpush1.msra.mxu0 0.0
        %391 = vmatprep.subr.mxu0 0.0
        %392 = vmatpush1.msra.mxu0 0.0
        %393 = vmatprep.subr.mxu0 0.0
        %394 = vmatpush1.msra.mxu0 0.0
        %395 = vmatprep.subr.mxu0 0.0
        %396 = vmatpush1.msra.mxu0 0.0
        %397 = vmatprep.subr.mxu0 0.0
        %398 = vmatpush1.msra.mxu0 0.0
        %399 = vmatprep.subr.mxu0 0.0
        %400 = vmatpush1.msra.mxu0 0.0
        %401 = vmatprep.subr.mxu0 0.0
        %402 = vmatpush1.msra.mxu0 0.0
        %403 = vmatprep.subr.mxu0 0.0
        %404 = vmatpush1.msra.mxu0 0.0
        %405 = vmatprep.subr.mxu0 0.0
        %406 = vmatpush1.msra.mxu0 0.0
        %407 = vmatprep.subr.mxu0 0.0
        %408 = vmatpush1.msra.mxu0 0.0
        %409 = vmatprep.subr.mxu0 0.0
        %410 = vmatpush1.msra.mxu0 0.0
        %411 = vmatprep.subr.mxu0 0.0
        %412 = vmatpush1.msra.mxu0 0.0
        %413 = vmatprep.subr.mxu0 0.0
        %414 = vmatpush1.msra.mxu0 0.0
        %415 = vmatprep.subr.mxu0 0.0
        %416 = vmatpush1.msra.mxu0 0.0
        %417 = vmatprep.subr.mxu0 0.0
        %418 = vmatpush1.msra.mxu0 0.0
        %419 = vmatprep.subr.mxu0 0.0
        %420 = vmatpush1.msra.mxu0 0.0
        %421 = vmatprep.subr.mxu0 0.0
        %422 = vmatpush1.msra.mxu0 0.0
        %423 = vmatprep.subr.mxu0 0.0
        %424 = vmatpush1.msra.mxu0 0.0
        %425 = vmatprep.subr.mxu0 0.0
        %426 = vmatpush1.msra.mxu0 0.0
        %427 = vmatprep.subr.mxu0 0.0
        %428 = vmatpush1.msra.mxu0 0.0
        %429 = vmatprep.subr.mxu0 0.0
        %430 = vmatpush1.msra.mxu0 0.0
        %431 = vmatprep.subr.mxu0 0.0
        %432 = vmatpush1.msra.mxu0 0.0
        %433 = vmatprep.subr.mxu0 0.0
        %434 = vmatpush1.msra.mxu0 0.0
        %435 = vmatprep.mubr.f32.mxu0 0.0
        %436 = vmatmul.mubr.f32.gmra.mrb[0].mxu0 %v369
        %v437 = vpop.f32.mrb[0].mxu0
        %v438 = vadd.f32 %v366, %v437
        %v439 = vpop.f32.mrb[0].mxu0
        %v440 = vadd.f32 %v366, %v439
        %441 = vdwg.mxu0
        %vm442 = vcmp.eq.s32.totalorder %v268, 1
        %v443 = vsel %vm442, 1, 0
        %v444 = vlaneseq
        %v445 = vshrl.u32 %v444, 7
        %v446 = vsub.s32 0, %v445
        %v447 = vrot.slane %v443, %v446
        %v448 = vlaneseq
        %v449 = vshrl.u32 %v448, 7
        %v450 = vsub.s32 1, %v449
        %v451 = vrot.slane %v443, %v450
        %vm452 = vcmp.eq.s32.totalorder %v447, 1
        %vm453 = vcmp.eq.s32.totalorder %v451, 1
        %v454 = vsel %vm452, %v438, %v361
        %v455 = vsel %vm453, %v440, %v362
        %457 = vset.pattern.permute.xlu0 0
        %458 = vperm.xlu0 %457, %v265
        %v459 = vpop.permute.xlu0 %458
        %v462 = vsel %vm274, %v262, 0
        %464 = vmatprep.subr.mxu0 %v267
        %465 = vmatpush1.msra.mxu0 %v266
        %466 = vmatprep.subr.mxu0 0.0
        %467 = vmatpush1.msra.mxu0 0.0
        %468 = vmatprep.subr.mxu0 0.0
        %469 = vmatpush1.msra.mxu0 0.0
        %470 = vmatprep.subr.mxu0 0.0
        %471 = vmatpush1.msra.mxu0 0.0
        %472 = vmatprep.subr.mxu0 0.0
        %473 = vmatpush1.msra.mxu0 0.0
        %474 = vmatprep.subr.mxu0 0.0
        %475 = vmatpush1.msra.mxu0 0.0
        %476 = vmatprep.subr.mxu0 0.0
        %477 = vmatpush1.msra.mxu0 0.0
        %478 = vmatprep.subr.mxu0 0.0
        %479 = vmatpush1.msra.mxu0 0.0
        %480 = vmatprep.subr.mxu0 0.0
        %481 = vmatpush1.msra.mxu0 0.0
        %482 = vmatprep.subr.mxu0 0.0
        %483 = vmatpush1.msra.mxu0 0.0
        %484 = vmatprep.subr.mxu0 0.0
        %485 = vmatpush1.msra.mxu0 0.0
        %486 = vmatprep.subr.mxu0 0.0
        %487 = vmatpush1.msra.mxu0 0.0
        %488 = vmatprep.subr.mxu0 0.0
        %489 = vmatpush1.msra.mxu0 0.0
        %490 = vmatprep.subr.mxu0 0.0
        %491 = vmatpush1.msra.mxu0 0.0
        %492 = vmatprep.subr.mxu0 0.0
        %493 = vmatpush1.msra.mxu0 0.0
        %494 = vmatprep.subr.mxu0 0.0
        %495 = vmatpush1.msra.mxu0 0.0
        %496 = vmatprep.subr.mxu0 0.0
        %497 = vmatpush1.msra.mxu0 0.0
        %498 = vmatprep.subr.mxu0 0.0
        %499 = vmatpush1.msra.mxu0 0.0
        %500 = vmatprep.subr.mxu0 0.0
        %501 = vmatpush1.msra.mxu0 0.0
        %502 = vmatprep.subr.mxu0 0.0
        %503 = vmatpush1.msra.mxu0 0.0
        %504 = vmatprep.subr.mxu0 0.0
        %505 = vmatpush1.msra.mxu0 0.0
        %506 = vmatprep.subr.mxu0 0.0
        %507 = vmatpush1.msra.mxu0 0.0
        %508 = vmatprep.subr.mxu0 0.0
        %509 = vmatpush1.msra.mxu0 0.0
        %510 = vmatprep.subr.mxu0 0.0
        %511 = vmatpush1.msra.mxu0 0.0
        %512 = vmatprep.subr.mxu0 0.0
        %513 = vmatpush1.msra.mxu0 0.0
        %514 = vmatprep.subr.mxu0 0.0
        %515 = vmatpush1.msra.mxu0 0.0
        %516 = vmatprep.subr.mxu0 0.0
        %517 = vmatpush1.msra.mxu0 0.0
        %518 = vmatprep.subr.mxu0 0.0
        %519 = vmatpush1.msra.mxu0 0.0
        %520 = vmatprep.subr.mxu0 0.0
        %521 = vmatpush1.msra.mxu0 0.0
        %522 = vmatprep.subr.mxu0 0.0
        %523 = vmatpush1.msra.mxu0 0.0
        %524 = vmatprep.subr.mxu0 0.0
        %525 = vmatpush1.msra.mxu0 0.0
        %526 = vmatprep.subr.mxu0 0.0
        %527 = vmatpush1.msra.mxu0 0.0
        %528 = vmatprep.mubr.f32.mxu0 0.0
        %529 = vmatmul.mubr.f32.gmra.mrb[0].mxu0 %v462
        %v530 = vpop.f32.mrb[0].mxu0
        %v531 = vadd.f32 %v459, %v530
        %v532 = vpop.f32.mrb[0].mxu0
        %v533 = vadd.f32 %v459, %v532
        %534 = vdwg.mxu0
        %vm535 = vcmp.eq.s32.totalorder %v268, 2
        %v536 = vsel %vm535, 1, 0
        %v537 = vlaneseq
        %v538 = vshrl.u32 %v537, 7
        %v539 = vsub.s32 0, %v538
        %v540 = vrot.slane %v536, %v539
        %v541 = vlaneseq
        %v542 = vshrl.u32 %v541, 7
        %v543 = vsub.s32 1, %v542
        %v544 = vrot.slane %v536, %v543
        %vm545 = vcmp.eq.s32.totalorder %v540, 1
        %vm546 = vcmp.eq.s32.totalorder %v544, 1
        %v547 = vsel %vm545, %v531, %v454
        %v548 = vsel %vm546, %v533, %v455
        %549 = vst [vmem:[%s239] sm:$0xff] %v547
        %550 = vst [vmem:[%s239 + $0x8] sm:$0xff] %v548
        %s551 = sand.u32 %s138, 1
        %s552 = scalar_lea.sflag [#allocation3], %s551
        %s553 = sand.u32 %s138, 1
        %s554 = smul.addr %s553, 16
        %s555 = scalar_lea.vmem [#allocation2], %s554
        // Predicated region
        $region37: #{tpu_custom_call.1} parent=35 // pred_check
          %p556 = pneg %p148
        $region38: #{tpu_custom_call.1} parent=35 // pred_check_branch
          %558 = sbr.rel (%p556) target = $region40
        $region39: #{tpu_custom_call.1} parent=35 // pred_region
          %s559 = smul.u32 2, %s23
          %s561 = ssub.s32 256, 256
          %562 = vsyncadd %s552, %s561
          %s563 = smul.addr %s22, 2
          %s564 = sadd.s32 %s559, %s563
          %s565 = smul.addr %s564, 128
          %s566 = scalar_lea.hbm %s4, %s565
          %s568 = sshll.u32 %s555, 4
          %s569 = int_to_ptr.vmem [resolvable:$true] %s568
          %571 = dma.vmem_to_hbm [thread:$0]  %s569, 256, %s566, %s552
        $region40: #{tpu_custom_call.1} parent=35 // pred_fallthru
          _
      $region36: #{tpu_custom_call.1} parent=5 // pred_fallthru
        _
      %p572 = scmp.le.s32.totalorder 2, %s13
      // Predicated region
      $region41: #{tpu_custom_call.1} parent=5 // pred_check
        %p573 = pneg %p572
      $region42: #{tpu_custom_call.1} parent=5 // pred_check_branch
        %575 = sbr.rel (%p573) target = $region44
      $region43: #{tpu_custom_call.1} parent=5 // pred_region
        %s576 = ssub.s32 %s13, 2
        // Predicated region
        $region45: #{tpu_custom_call.1} parent=43 // pred_check
          %p577 = pneg %p154
        $region46: #{tpu_custom_call.1} parent=43 // pred_check_branch
          %579 = sbr.rel (%p577) target = $region48
        $region47: #{tpu_custom_call.1} parent=43 // pred_region
          %s580 = sand.u32 %s139, 1
          %s581 = scalar_lea.sflag [#allocation3], %s580
          %s582 = sand.u32 %s139, 1
          %s583 = smul.addr %s582, 16
          %s584 = scalar_lea.vmem [#allocation2], %s583
          %585 = dma.done %s581, 256
        $region48: #{tpu_custom_call.1} parent=43 // pred_fallthru
          _
      $region44: #{tpu_custom_call.1} parent=5 // pred_fallthru
        _
    $region6: #{tpu_custom_call.1} parent=1 // loop_footer
      %s17 = sadd.s32 1, %s13
    $region7: #{tpu_custom_call.1} parent=1 // loop_footer_branch
      %12 = sbr.rel target = $region3
    $region8: #{tpu_custom_call.1} parent=1 // loop_exit
      _
    %586 = vsyncpa [#allocation3], 1
    %s587 = scalar_lea.sflag [#allocation3], 1
    %588 = vsyncpa %s587, 1

</llo_original>
